<compile_context>
chip_gen: v6e
topology: v6e:2x2x1
jax: 0.10.0
libtpu: 0.0.40
codegen_flags: <defaults>
</compile_context>

<pallas_src>
import functools

import jax
import jax.numpy as jnp
from jax.experimental import pallas as pl
from jax.experimental.pallas import tpu as pltpu


def _round_up(x, m):
    return ((x + m - 1) // m) * m


def _cdiv(a, b):
    return (a + b - 1) // b


@functools.lru_cache(maxsize=1)
def _vmem_capacity_bytes():
    """Physical VMEM per core; conservative 64 MiB (v7x) fallback if query fails."""
    try:
        cap = int(pltpu.get_tpu_info().vmem_capacity_bytes)
        if 16 * 1024 * 1024 <= cap <= 1024 * 1024 * 1024:
            return cap
    except Exception:
        pass
    return 64 * 1024 * 1024


# ----------------------------- kernels --------------------------------------

def _ffn_kernel_single(x_ref, w1_ref, b1_ref, w2_ref, b2_ref, o_ref):
    """Weights-resident path: whole d_ff in one MXU pass, no accumulator scratch."""
    h = jnp.dot(x_ref[...], w1_ref[...], preferred_element_type=jnp.float32)
    h = jnp.maximum(h + b1_ref[...].astype(jnp.float32), 0.0)
    y = jnp.dot(h.astype(w2_ref.dtype), w2_ref[...],
                preferred_element_type=jnp.float32)
    o_ref[...] = (y + b2_ref[...].astype(jnp.float32)).astype(o_ref.dtype)


def _ffn_kernel_multi(x_ref, w1_ref, b1_ref, w2_ref, b2_ref, o_ref, acc_ref):
    """Streaming path: d_ff slabs reduce into an f32 VMEM accumulator."""
    k = pl.program_id(1)

    @pl.when(k == 0)
    def _init():
        acc_ref[...] = jnp.zeros_like(acc_ref)

    h = jnp.dot(x_ref[...], w1_ref[...], preferred_element_type=jnp.float32)
    h = jnp.maximum(h + b1_ref[...].astype(jnp.float32), 0.0)
    acc_ref[...] += jnp.dot(h.astype(w2_ref.dtype), w2_ref[...],
                            preferred_element_type=jnp.float32)

    @pl.when(k == pl.num_programs(1) - 1)
    def _finalize():
        o_ref[...] = (acc_ref[...] + b2_ref[...].astype(jnp.float32)).astype(o_ref.dtype)


# ----------------------------- wrapper ---------------------------------------

def _pad2d(a, rows, cols):
    pr, pc = rows - a.shape[0], cols - a.shape[1]
    if pr == 0 and pc == 0:
        return a
    return jnp.pad(a, ((0, pr), (0, pc)))


def prepare_params(w1, b1, w2, b2):
    """Pad params to lane-aligned (multiple-of-128) shapes ONCE, outside the jitted
    hot path. Zero padding is exactly neutral through both matmuls + ReLU."""
    d_in, d_ff = w1.shape
    d_out = w2.shape[1]
    d_in_p = _round_up(d_in, 128)
    d_ff_p = _round_up(d_ff, 128)
    d_out_p = _round_up(d_out, 128)
    return (_pad2d(w1, d_in_p, d_ff_p),
            _pad2d(b1.reshape(1, -1), 1, d_ff_p),
            _pad2d(w2, d_ff_p, d_out_p),
            _pad2d(b2.reshape(1, -1), 1, d_out_p))


@functools.partial(jax.jit, static_argnames=("block_rows", "block_ff"))
def feed_forward(x, w1, b1, w2, b2, *, block_rows=None, block_ff=None):
    """x: (..., d_model) -> (..., d_model). Fused FFN in one pallas_call.

    Weights stored (in, out): y = relu(x @ w1 + b1) @ w2 + b2
    (equivalent to torch Linear with weight stored (out, in)).
    Params may be raw or pre-padded via prepare_params().
    """
    orig_shape = x.shape
    d_model = x.shape[-1]
    x2d = x.reshape(-1, d_model)
    n = x2d.shape[0]

    b1 = b1.reshape(1, -1)
    b2 = b2.reshape(1, -1)

    x_item = jnp.dtype(x.dtype).itemsize
    w_item = jnp.dtype(w1.dtype).itemsize

    # ---- aligned feature dims (params may already be pre-padded) ----
    d_model_p = _round_up(max(d_model, w1.shape[0], w2.shape[1], b2.shape[1]), 128)
    d_ff_p = _round_up(max(w1.shape[1], w2.shape[0], b1.shape[1]), 128)

    # ---- generation-aware VMEM budget ----
    phys = _vmem_capacity_bytes()
    budget = int(phys * 0.80)        # planning budget for tile geometry
    limit_cap = int(phys * 0.85)     # hard cap handed to the compiler

    # ---- row tile: dtype-aware sublane multiple, large enough to amortize
    #      streamed weight-slab DMA (HBM-ridge) ----
    sub = {4: 8, 2: 16, 1: 32}.get(x_item, 8)
    if block_rows is None:
        block_rows = 1024 if x_item >= 4 else 512
    n_sub = _round_up(max(n, 1), sub)
    tm = _round_up(min(block_rows, n_sub), sub)

    def vmem_bytes(tm_, tff_):
        return (
            4 * d_model_p * tff_ * w_item        # W1 + W2 slabs (double-buffered)
            + 2 * (tff_ + d_model_p) * w_item    # b1 slab + b2  (double-buffered)
            + 4 * tm_ * d_model_p * x_item       # x tile + out tile (double-buffered)
            + tm_ * d_model_p * 4                # f32 accumulator / pre-cast result
            + tm_ * tff_ * (4 + w_item)          # hidden chunk: f32 + cast copy
        )

    # shrink tm if even the narrowest slab cannot fit the budget
    while tm > sub and vmem_bytes(tm, 128) > budget:
        tm = max(sub, _round_up(tm // 2, sub))

    # ---- d_ff slab: as wide as the budget allows (weights-resident when it fits) ----
    fixed = 4 * tm * d_model_p * x_item + tm * d_model_p * 4 + 2 * d_model_p * w_item
    per_col = 4 * d_model_p * w_item + 2 * w_item + tm * (4 + w_item)
    tff_cap = max((budget - fixed) // per_col, 128)
    tff = min(d_ff_p, (tff_cap // 128) * 128)
    if block_ff is not None:
        tff = min(tff, _round_up(block_ff, 128))
    tff = max(tff, 128)

    num_k = _cdiv(d_ff_p, tff)
    tff = _round_up(_cdiv(d_ff_p, num_k), 128)   # keep slab over-padding < 128/step
    d_ff_g = num_k * tff

    n_p = _round_up(n, tm)

    # ---- pad operands (no-ops when already aligned / pre-padded) ----
    x_p = _pad2d(x2d, n_p, d_model_p)
    w1_p = _pad2d(w1, d_model_p, d_ff_g)
    b1_p = _pad2d(b1, 1, d_ff_g)
    w2_p = _pad2d(w2, d_ff_g, d_model_p)
    b2_p = _pad2d(b2, 1, d_model_p)

    est = vmem_bytes(tm, tff)
    vmem_limit = min(limit_cap, max(32 * 1024 * 1024, int(est * 1.3)))

    num_row_tiles = n_p // tm
    flops = 4 * n_p * d_model_p * d_ff_g    # two matmuls, 2 flops/MAC
    weight_bytes = (w1_p.size + w2_p.size + b1_p.size + b2_p.size) * w_item
    bytes_accessed = (2 * n_p * d_model_p * x_item
                      + (num_row_tiles if num_k > 1 else 1) * weight_bytes)
    cost = pl.CostEstimate(flops=flops, transcendentals=0,
                           bytes_accessed=bytes_accessed)

    if num_k == 1:
        # Weights-resident fast path: 1-D grid, constant weight block index
        # (DMA'd once, kept resident), no accumulator scratch, no pl.when phases.
        grid = (num_row_tiles,)
        in_specs = [
            pl.BlockSpec((tm, d_model_p), lambda i: (i, 0)),      # x row tile
            pl.BlockSpec((d_model_p, d_ff_g), lambda i: (0, 0)),  # W1 (resident)
            pl.BlockSpec((1, d_ff_g), lambda i: (0, 0)),          # b1
            pl.BlockSpec((d_ff_g, d_model_p), lambda i: (0, 0)),  # W2 (resident)
            pl.BlockSpec((1, d_model_p), lambda i: (0, 0)),       # b2
        ]
        out_specs = pl.BlockSpec((tm, d_model_p), lambda i: (i, 0))
        scratch_shapes = []
        kernel = _ffn_kernel_single
        dim_sem = ("parallel",)
    else:
        # Streaming path: d_ff slabs reduced into an f32 accumulator.
        grid = (num_row_tiles, num_k)
        in_specs = [
            pl.BlockSpec((tm, d_model_p), lambda i, k: (i, 0)),   # x row tile
            pl.BlockSpec((d_model_p, tff), lambda i, k: (0, k)),  # W1 slab (streamed)
            pl.BlockSpec((1, tff), lambda i, k: (0, k)),          # b1 slab
            pl.BlockSpec((tff, d_model_p), lambda i, k: (k, 0)),  # W2 slab (streamed)
            pl.BlockSpec((1, d_model_p), lambda i, k: (0, 0)),    # b2
        ]
        out_specs = pl.BlockSpec((tm, d_model_p), lambda i, k: (i, 0))
        scratch_shapes = [pltpu.VMEM((tm, d_model_p), jnp.float32)]
        kernel = _ffn_kernel_multi
        dim_sem = ("parallel", "arbitrary")

    out = pl.pallas_call(
        kernel,
        out_shape=jax.ShapeDtypeStruct((n_p, d_model_p), x.dtype),
        grid_spec=pltpu.PrefetchScalarGridSpec(
            num_scalar_prefetch=0,
            grid=grid,
            in_specs=in_specs,
            out_specs=out_specs,
            scratch_shapes=scratch_shapes,
        ),
        compiler_params=pltpu.CompilerParams(
            dimension_semantics=dim_sem,
            vmem_limit_bytes=vmem_limit,
        ),
        cost_estimate=cost,
    )(x_p, w1_p, b1_p, w2_p, b2_p)

    return out[:n, :d_model].reshape(orig_shape)


def init_params(key, d_model, dtype=jnp.float32):
    """Param init mimicking Linear(gain='relu') / default Linear. Stored (in, out)."""
    d_ff = 4 * d_model
    k1, k2 = jax.random.split(key)
    w1 = jax.random.normal(k1, (d_model, d_ff), dtype) * jnp.sqrt(2.0 / d_model)
    b1 = jnp.zeros((d_ff,), dtype)
    w2 = jax.random.normal(k2, (d_ff, d_model), dtype) * (1.0 / jnp.sqrt(d_ff))
    b2 = jnp.zeros((d_model,), dtype)
    return w1, b1, w2, b2


def _reference(x, w1, b1, w2, b2):
    return jnp.maximum(x @ w1 + b1, 0.0) @ w2 + b2


if __name__ == "__main__":
    # ---- small shape consistent with the module spec (resident / single-step path) ----
    batch, seq, d_model = 2, 8, 32
    key = jax.random.PRNGKey(0)
    kx, kp = jax.random.split(key)
    x = jax.random.normal(kx, (batch, seq, d_model), jnp.float32)
    w1, b1, w2, b2 = init_params(kp, d_model)
    padded = prepare_params(w1, b1, w2, b2)      # pad once, outside the jitted call

    out = jax.block_until_ready(feed_forward(x, *padded))
    ref = _reference(x, w1, b1, w2, b2)
    assert out.shape == x.shape
    assert jnp.allclose(out, ref, atol=1e-4, rtol=1e-4), "mismatch vs reference (small)"

    # ---- second check: ragged rows + forced multi-k-step streaming/accumulator path ----
    batch2, seq2, d_model2 = 3, 100, 256          # n=300 (not tile-aligned), d_ff=1024
    kx2, kp2 = jax.random.split(jax.random.PRNGKey(1))
    x2 = jax.random.normal(kx2, (batch2, seq2, d_model2), jnp.float32)
    p2 = init_params(kp2, d_model2)
    padded2 = prepare_params(*p2)
    out2 = jax.block_until_ready(feed_forward(x2, *padded2, block_ff=128))  # 8 k-steps
    ref2 = _reference(x2, *p2)
    assert out2.shape == x2.shape
    assert jnp.allclose(out2, ref2, atol=2e-3, rtol=2e-3), "mismatch vs reference (tiled)"

    print("KERNEL_OK")
</pallas_src>

<mosaic_0001>
module attributes {stable_mosaic.version = 11 : i64} {
  func.func @_ffn_kernel_single(%arg0: i32, %arg1: memref<16x128xf32, #tpu.memory_space<vmem>>, %arg2: memref<128x128xf32, #tpu.memory_space<vmem>>, %arg3: memref<1x128xf32, #tpu.memory_space<vmem>>, %arg4: memref<128x128xf32, #tpu.memory_space<vmem>>, %arg5: memref<1x128xf32, #tpu.memory_space<vmem>>, %arg6: memref<16x128xf32, #tpu.memory_space<vmem>>) attributes {dimension_semantics = [#tpu.dimension_semantics<parallel>], iteration_bounds = array<i64: 1>, scalar_prefetch = 0 : i64, scratch_operands = 0 : i64, tpu.core_type = #tpu.core_type<tc>, window_params = [{transform_indices = @transform_0, window_bounds = array<i64: 16, 128>}, {pipeline_mode = #tpu.pipeline_mode<synchronous>, transform_indices = @transform_1, window_bounds = array<i64: 128, 128>}, {pipeline_mode = #tpu.pipeline_mode<synchronous>, transform_indices = @transform_2, window_bounds = array<i64: 1, 128>}, {pipeline_mode = #tpu.pipeline_mode<synchronous>, transform_indices = @transform_3, window_bounds = array<i64: 128, 128>}, {pipeline_mode = #tpu.pipeline_mode<synchronous>, transform_indices = @transform_4, window_bounds = array<i64: 1, 128>}, {transform_indices = @transform_5, window_bounds = array<i64: 16, 128>}]} {
    %c0 = arith.constant 0 : index
    %c0_0 = arith.constant 0 : index
    %0 = vector.load %arg1[%c0, %c0_0] : memref<16x128xf32, #tpu.memory_space<vmem>>, vector<16x128xf32>
    %c0_1 = arith.constant 0 : index
    %c0_2 = arith.constant 0 : index
    %1 = vector.load %arg2[%c0_1, %c0_2] : memref<128x128xf32, #tpu.memory_space<vmem>>, vector<128x128xf32>
    %cst = arith.constant dense<0.000000e+00> : vector<16x128xf32>
    %2 = tpu.matmul %0, %1, %cst {dimension_numbers = #tpu.dot_dimension_numbers<[1], [0], [0], [1], [0, 0, 1, 1], [], []>} : vector<16x128xf32>, vector<128x128xf32>, vector<16x128xf32> -> vector<16x128xf32>
    %c0_3 = arith.constant 0 : index
    %c0_4 = arith.constant 0 : index
    %3 = vector.load %arg3[%c0_3, %c0_4] : memref<1x128xf32, #tpu.memory_space<vmem>>, vector<1x128xf32>
    %4 = vector.broadcast %3 : vector<1x128xf32> to vector<16x128xf32>
    %5 = arith.addf %2, %4 : vector<16x128xf32>
    %cst_5 = arith.constant 0.000000e+00 : f32
    %6 = vector.broadcast %cst_5 : f32 to vector<16x128xf32>
    %7 = arith.maximumf %5, %6 : vector<16x128xf32>
    %c0_6 = arith.constant 0 : index
    %c0_7 = arith.constant 0 : index
    %8 = vector.load %arg4[%c0_6, %c0_7] : memref<128x128xf32, #tpu.memory_space<vmem>>, vector<128x128xf32>
    %cst_8 = arith.constant dense<0.000000e+00> : vector<16x128xf32>
    %9 = tpu.matmul %7, %8, %cst_8 {dimension_numbers = #tpu.dot_dimension_numbers<[1], [0], [0], [1], [0, 0, 1, 1], [], []>} : vector<16x128xf32>, vector<128x128xf32>, vector<16x128xf32> -> vector<16x128xf32>
    %c0_9 = arith.constant 0 : index
    %c0_10 = arith.constant 0 : index
    %10 = vector.load %arg5[%c0_9, %c0_10] : memref<1x128xf32, #tpu.memory_space<vmem>>, vector<1x128xf32>
    %11 = vector.broadcast %10 : vector<1x128xf32> to vector<16x128xf32>
    %12 = arith.addf %9, %11 : vector<16x128xf32>
    %c0_11 = arith.constant 0 : index
    %c0_12 = arith.constant 0 : index
    %13 = vector.load %arg6[%c0_11, %c0_12] : memref<16x128xf32, #tpu.memory_space<vmem>>, vector<16x128xf32>
    tpu.vector_store %arg6[%c0_11, %c0_12], %12 {strides = array<i32>} : memref<16x128xf32, #tpu.memory_space<vmem>>, vector<16x128xf32>,
    return
  }
  func.func @transform_0(%arg0: i32) -> (i32, i32) {
    %c0_i32 = arith.constant 0 : i32
    %c0_i32_0 = arith.constant 0 : i32
    return %arg0, %c0_i32 : i32, i32
  }
  func.func @transform_1(%arg0: i32) -> (i32, i32) {
    %c0_i32 = arith.constant 0 : i32
    %c0_i32_0 = arith.constant 0 : i32
    %c0_i32_1 = arith.constant 0 : i32
    return %c0_i32, %c0_i32_0 : i32, i32
  }
  func.func @transform_2(%arg0: i32) -> (i32, i32) {
    %c0_i32 = arith.constant 0 : i32
    %c0_i32_0 = arith.constant 0 : i32
    %c0_i32_1 = arith.constant 0 : i32
    return %c0_i32, %c0_i32_0 : i32, i32
  }
  func.func @transform_3(%arg0: i32) -> (i32, i32) {
    %c0_i32 = arith.constant 0 : i32
    %c0_i32_0 = arith.constant 0 : i32
    %c0_i32_1 = arith.constant 0 : i32
    return %c0_i32, %c0_i32_0 : i32, i32
  }
  func.func @transform_4(%arg0: i32) -> (i32, i32) {
    %c0_i32 = arith.constant 0 : i32
    %c0_i32_0 = arith.constant 0 : i32
    %c0_i32_1 = arith.constant 0 : i32
    return %c0_i32, %c0_i32_0 : i32, i32
  }
  func.func @transform_5(%arg0: i32) -> (i32, i32) {
    %c0_i32 = arith.constant 0 : i32
    %c0_i32_0 = arith.constant 0 : i32
    return %arg0, %c0_i32 : i32, i32
  }
}

</mosaic_0001>

<llo_original>
// kernel: feed_forward.1
$region0: #{feed_forward.1}
  #allocation0 [shape = 'u32[]', space=smem, size = 0x4, offset = 0x4, fixed_abs, tag = 'smem constant byte address 0x4 - core index']
  #allocation1 [shape = 'u32[144,128]{1,0:T(1,128)}', space=vmem, size = 0x12000, scoped, tag = 'internal scratch']
  %s0 = inlined_call_operand.vmem [shape: f32[16,128], index: 0, kind: input, shape index: {}]
  %s1 = inlined_call_operand.hbm [shape: f32[128,128], index: 1, kind: input, shape index: {}]
  %s2 = inlined_call_operand.vmem [shape: f32[1,128], index: 2, kind: input, shape index: {}]
  %s3 = inlined_call_operand.hbm [shape: f32[128,128], index: 3, kind: input, shape index: {}]
  %s4 = inlined_call_operand.vmem [shape: f32[1,128], index: 4, kind: input, shape index: {}]
  %s5 = inlined_call_operand.vmem [shape: f32[16,128], index: 5, kind: output, shape index: {}]
  %s6 = sld [smem:[#allocation0]]
  $region38: #{feed_forward.1} parent=0
    _
  %s8 = ssub.s32 1, %s6
  %s9 = scalar_select 0, %s8, %s6
  $region1: #{feed_forward.1} parent=0
    #allocation2 [shape = 'u8[65536]{0}', space=vmem, size = 0x10000, scoped, tag = 'input window, operand 1, single buffered']
    #allocation3 [shape = 's32[1]{0}', space=sflag, size = 0x4, scoped, tag = 'scoped memory for feed_forward.1']
    #allocation4 [shape = 'u8[65536]{0}', space=vmem, size = 0x10000, scoped, tag = 'input window, operand 3, single buffered']
    #allocation5 [shape = 's32[1]{0}', space=sflag, size = 0x4, scoped, tag = 'scoped memory for feed_forward.1']
    %10 = vsyncpa [#allocation3], 0
    %11 = vsyncpa [#allocation5], 0
    // Predicated region
    $region2: #{feed_forward.1} parent=1 // pred_check
      _
    $region3: #{feed_forward.1} parent=1 // pred_check_branch
      %13 = sbr.rel (0) target = $region5
    $region4: #{feed_forward.1} parent=1 // pred_region
      _
    $region5: #{feed_forward.1} parent=1 // pred_fallthru
      _
    // Predicated region
    $region6: #{feed_forward.1} parent=1 // pred_check
      _
    $region7: #{feed_forward.1} parent=1 // pred_check_branch
      %15 = sbr.rel (0) target = $region9
    $region8: #{feed_forward.1} parent=1 // pred_region
      %s17 = ssub.s32 2048, 2048
      %18 = vsyncadd [#allocation3], %s17
      %s19 = sshll.u32 [#allocation2], 4
      %s20 = int_to_ptr.vmem [resolvable:$true] %s19
      %25 = dma.hbm_to_vmem [thread:$0]  %s1, 2048, %s20, [#allocation3], 128, 128, 8
    $region9: #{feed_forward.1} parent=1 // pred_fallthru
      _
    // Predicated region
    $region10: #{feed_forward.1} parent=1 // pred_check
      _
    $region11: #{feed_forward.1} parent=1 // pred_check_branch
      %27 = sbr.rel (0) target = $region13
    $region12: #{feed_forward.1} parent=1 // pred_region
      _
    $region13: #{feed_forward.1} parent=1 // pred_fallthru
      _
    // Predicated region
    $region14: #{feed_forward.1} parent=1 // pred_check
      _
    $region15: #{feed_forward.1} parent=1 // pred_check_branch
      %29 = sbr.rel (0) target = $region17
    $region16: #{feed_forward.1} parent=1 // pred_region
      %s31 = ssub.s32 2048, 2048
      %32 = vsyncadd [#allocation5], %s31
      %s33 = sshll.u32 [#allocation4], 4
      %s34 = int_to_ptr.vmem [resolvable:$true] %s33
      %39 = dma.hbm_to_vmem [thread:$0]  %s3, 2048, %s34, [#allocation5], 128, 128, 8
    $region17: #{feed_forward.1} parent=1 // pred_fallthru
      _
    // Predicated region
    $region18: #{feed_forward.1} parent=1 // pred_check
      _
    $region19: #{feed_forward.1} parent=1 // pred_check_branch
      %41 = sbr.rel (0) target = $region21
    $region20: #{feed_forward.1} parent=1 // pred_region
      _
    $region21: #{feed_forward.1} parent=1 // pred_fallthru
      _
    // Predicated region
    $region22: #{feed_forward.1} parent=1 // pred_check
      _
    $region23: #{feed_forward.1} parent=1 // pred_check_branch
      %43 = sbr.rel (0) target = $region25
    $region24: #{feed_forward.1} parent=1 // pred_region
      %44 = dma.done [#allocation3], 2048
    $region25: #{feed_forward.1} parent=1 // pred_fallthru
      _
    // Predicated region
    $region26: #{feed_forward.1} parent=1 // pred_check
      _
    $region27: #{feed_forward.1} parent=1 // pred_check_branch
      %46 = sbr.rel (0) target = $region29
    $region28: #{feed_forward.1} parent=1 // pred_region
      %47 = dma.done [#allocation5], 2048
    $region29: #{feed_forward.1} parent=1 // pred_fallthru
      _
    %v48 = vld [vmem:[%s0] sm:$0xff]
    %v49 = vld [vmem:[%s0 + $0x8] sm:$0xff]
    %v50 = vld [vmem:[#allocation2] sm:$0xff]
    %v51 = vld [vmem:[#allocation2 + $0x8] sm:$0xff]
    %v52 = vld [vmem:[#allocation2 + $0x10] sm:$0xff]
    %v53 = vld [vmem:[#allocation2 + $0x18] sm:$0xff]
    %v54 = vld [vmem:[#allocation2 + $0x20] sm:$0xff]
    %v55 = vld [vmem:[#allocation2 + $0x28] sm:$0xff]
    %v56 = vld [vmem:[#allocation2 + $0x30] sm:$0xff]
    %v57 = vld [vmem:[#allocation2 + $0x38] sm:$0xff]
    %v58 = vld [vmem:[#allocation2 + $0x40] sm:$0xff]
    %v59 = vld [vmem:[#allocation2 + $0x48] sm:$0xff]
    %v60 = vld [vmem:[#allocation2 + $0x50] sm:$0xff]
    %v61 = vld [vmem:[#allocation2 + $0x58] sm:$0xff]
    %v62 = vld [vmem:[#allocation2 + $0x60] sm:$0xff]
    %v63 = vld [vmem:[#allocation2 + $0x68] sm:$0xff]
    %v64 = vld [vmem:[#allocation2 + $0x70] sm:$0xff]
    %v65 = vld [vmem:[#allocation2 + $0x78] sm:$0xff]
    %v66 = vld [vmem:[%s2] sm:$0x1]
    %v68 = vlaneseq
    %v69 = vshrl.u32 %v68, 7
    %v70 = vsub.s32 0, %v69
    %v71 = vrot.slane %v66, %v70
    %73 = vmatprep.subr.mxu0 0.0
    %74 = vmatpush1.msra.mxu0 %v65
    %75 = vmatprep.subr.mxu0 0.0
    %76 = vmatpush1.msra.mxu0 %v64
    %77 = vmatprep.subr.mxu0 0.0
    %78 = vmatpush1.msra.mxu0 %v63
    %79 = vmatprep.subr.mxu0 0.0
    %80 = vmatpush1.msra.mxu0 %v62
    %81 = vmatprep.subr.mxu0 0.0
    %82 = vmatpush1.msra.mxu0 %v61
    %83 = vmatprep.subr.mxu0 0.0
    %84 = vmatpush1.msra.mxu0 %v60
    %85 = vmatprep.subr.mxu0 0.0
    %86 = vmatpush1.msra.mxu0 %v59
    %87 = vmatprep.subr.mxu0 0.0
    %88 = vmatpush1.msra.mxu0 %v58
    %89 = vmatprep.subr.mxu0 0.0
    %90 = vmatpush1.msra.mxu0 %v57
    %91 = vmatprep.subr.mxu0 0.0
    %92 = vmatpush1.msra.mxu0 %v56
    %93 = vmatprep.subr.mxu0 0.0
    %94 = vmatpush1.msra.mxu0 %v55
    %95 = vmatprep.subr.mxu0 0.0
    %96 = vmatpush1.msra.mxu0 %v54
    %97 = vmatprep.subr.mxu0 0.0
    %98 = vmatpush1.msra.mxu0 %v53
    %99 = vmatprep.subr.mxu0 0.0
    %100 = vmatpush1.msra.mxu0 %v52
    %101 = vmatprep.subr.mxu0 0.0
    %102 = vmatpush1.msra.mxu0 %v51
    %103 = vmatprep.subr.mxu0 0.0
    %104 = vmatpush1.msra.mxu0 %v50
    %105 = vmatprep.subr.mxu0 0.0
    %106 = vmatpush2.msra.mxu0 0.0
    %107 = vmatprep.subr.mxu0 0.0
    %108 = vmatpush2.msra.mxu0 0.0
    %109 = vmatprep.subr.mxu0 0.0
    %110 = vmatpush2.msra.mxu0 0.0
    %111 = vmatprep.subr.mxu0 0.0
    %112 = vmatpush2.msra.mxu0 0.0
    %113 = vmatprep.subr.mxu0 0.0
    %114 = vmatpush2.msra.mxu0 0.0
    %115 = vmatprep.subr.mxu0 0.0
    %116 = vmatpush2.msra.mxu0 0.0
    %117 = vmatprep.subr.mxu0 0.0
    %118 = vmatpush2.msra.mxu0 0.0
    %119 = vmatprep.subr.mxu0 0.0
    %120 = vmatpush2.msra.mxu0 0.0
    %121 = vmatprep.subr.mxu0 0.0
    %122 = vmatpush2.msra.mxu0 0.0
    %123 = vmatprep.subr.mxu0 0.0
    %124 = vmatpush2.msra.mxu0 0.0
    %125 = vmatprep.subr.mxu0 0.0
    %126 = vmatpush2.msra.mxu0 0.0
    %127 = vmatprep.subr.mxu0 0.0
    %128 = vmatpush2.msra.mxu0 0.0
    %129 = vmatprep.subr.mxu0 0.0
    %130 = vmatpush2.msra.mxu0 0.0
    %131 = vmatprep.subr.mxu0 0.0
    %132 = vmatpush2.msra.mxu0 0.0
    %133 = vmatprep.subr.mxu0 0.0
    %134 = vmatpush2.msra.mxu0 0.0
    %135 = vmatprep.subr.mxu0 0.0
    %136 = vmatpush2.msra.mxu0 0.0
    %137 = vmatprep.mubr.f32.mxu0 0.0
    %138 = vmatmul.mubr.f32.gmra.mxu0 %v48
    %v139 = vpop.f32.mrf.mxu0
    %v140 = vadd.f32 %v71, %v139
    %v141 = vpop.f32.mrf.mxu0
    %142 = vmatprep.mubr.f32.mxu0 0.0
    %143 = vmatmul.mubr.f32.gmra.mxu0 %v49
    %v144 = vpop.f32.mrf.mxu0
    %v145 = vadd.f32 %v71, %v144
    %v146 = vpop.f32.mrf.mxu0
    %147 = vdwg.mxu0
    %v148 = vmax.f32 %v140, 0.0
    %v149 = vmax.f32 %v145, 0.0
    %v150 = vld [vmem:[#allocation4] sm:$0xff]
    %v151 = vld [vmem:[#allocation4 + $0x8] sm:$0xff]
    %v152 = vld [vmem:[#allocation4 + $0x10] sm:$0xff]
    %v153 = vld [vmem:[#allocation4 + $0x18] sm:$0xff]
    %v154 = vld [vmem:[#allocation4 + $0x20] sm:$0xff]
    %v155 = vld [vmem:[#allocation4 + $0x28] sm:$0xff]
    %v156 = vld [vmem:[#allocation4 + $0x30] sm:$0xff]
    %v157 = vld [vmem:[#allocation4 + $0x38] sm:$0xff]
    %v158 = vld [vmem:[#allocation4 + $0x40] sm:$0xff]
    %v159 = vld [vmem:[#allocation4 + $0x48] sm:$0xff]
    %v160 = vld [vmem:[#allocation4 + $0x50] sm:$0xff]
    %v161 = vld [vmem:[#allocation4 + $0x58] sm:$0xff]
    %v162 = vld [vmem:[#allocation4 + $0x60] sm:$0xff]
    %v163 = vld [vmem:[#allocation4 + $0x68] sm:$0xff]
    %v164 = vld [vmem:[#allocation4 + $0x70] sm:$0xff]
    %v165 = vld [vmem:[#allocation4 + $0x78] sm:$0xff]
    %v166 = vld [vmem:[%s4] sm:$0x1]
    %v168 = vlaneseq
    %v169 = vshrl.u32 %v168, 7
    %v170 = vsub.s32 0, %v169
    %v171 = vrot.slane %v166, %v170
    %173 = vmatprep.subr.mxu0 0.0
    %174 = vmatpush1.msra.mxu0 %v165
    %175 = vmatprep.subr.mxu0 0.0
    %176 = vmatpush1.msra.mxu0 %v164
    %177 = vmatprep.subr.mxu0 0.0
    %178 = vmatpush1.msra.mxu0 %v163
    %179 = vmatprep.subr.mxu0 0.0
    %180 = vmatpush1.msra.mxu0 %v162
    %181 = vmatprep.subr.mxu0 0.0
    %182 = vmatpush1.msra.mxu0 %v161
    %183 = vmatprep.subr.mxu0 0.0
    %184 = vmatpush1.msra.mxu0 %v160
    %185 = vmatprep.subr.mxu0 0.0
    %186 = vmatpush1.msra.mxu0 %v159
    %187 = vmatprep.subr.mxu0 0.0
    %188 = vmatpush1.msra.mxu0 %v158
    %189 = vmatprep.subr.mxu0 0.0
    %190 = vmatpush1.msra.mxu0 %v157
    %191 = vmatprep.subr.mxu0 0.0
    %192 = vmatpush1.msra.mxu0 %v156
    %193 = vmatprep.subr.mxu0 0.0
    %194 = vmatpush1.msra.mxu0 %v155
    %195 = vmatprep.subr.mxu0 0.0
    %196 = vmatpush1.msra.mxu0 %v154
    %197 = vmatprep.subr.mxu0 0.0
    %198 = vmatpush1.msra.mxu0 %v153
    %199 = vmatprep.subr.mxu0 0.0
    %200 = vmatpush1.msra.mxu0 %v152
    %201 = vmatprep.subr.mxu0 0.0
    %202 = vmatpush1.msra.mxu0 %v151
    %203 = vmatprep.subr.mxu0 0.0
    %204 = vmatpush1.msra.mxu0 %v150
    %205 = vmatprep.subr.mxu0 0.0
    %206 = vmatpush2.msra.mxu0 0.0
    %207 = vmatprep.subr.mxu0 0.0
    %208 = vmatpush2.msra.mxu0 0.0
    %209 = vmatprep.subr.mxu0 0.0
    %210 = vmatpush2.msra.mxu0 0.0
    %211 = vmatprep.subr.mxu0 0.0
    %212 = vmatpush2.msra.mxu0 0.0
    %213 = vmatprep.subr.mxu0 0.0
    %214 = vmatpush2.msra.mxu0 0.0
    %215 = vmatprep.subr.mxu0 0.0
    %216 = vmatpush2.msra.mxu0 0.0
    %217 = vmatprep.subr.mxu0 0.0
    %218 = vmatpush2.msra.mxu0 0.0
    %219 = vmatprep.subr.mxu0 0.0
    %220 = vmatpush2.msra.mxu0 0.0
    %221 = vmatprep.subr.mxu0 0.0
    %222 = vmatpush2.msra.mxu0 0.0
    %223 = vmatprep.subr.mxu0 0.0
    %224 = vmatpush2.msra.mxu0 0.0
    %225 = vmatprep.subr.mxu0 0.0
    %226 = vmatpush2.msra.mxu0 0.0
    %227 = vmatprep.subr.mxu0 0.0
    %228 = vmatpush2.msra.mxu0 0.0
    %229 = vmatprep.subr.mxu0 0.0
    %230 = vmatpush2.msra.mxu0 0.0
    %231 = vmatprep.subr.mxu0 0.0
    %232 = vmatpush2.msra.mxu0 0.0
    %233 = vmatprep.subr.mxu0 0.0
    %234 = vmatpush2.msra.mxu0 0.0
    %235 = vmatprep.subr.mxu0 0.0
    %236 = vmatpush2.msra.mxu0 0.0
    %237 = vmatprep.mubr.f32.mxu0 0.0
    %238 = vmatmul.mubr.f32.gmra.mxu0 %v148
    %v239 = vpop.f32.mrf.mxu0
    %v240 = vadd.f32 %v171, %v239
    %v241 = vpop.f32.mrf.mxu0
    %242 = vmatprep.mubr.f32.mxu0 0.0
    %243 = vmatmul.mubr.f32.gmra.mxu0 %v149
    %v244 = vpop.f32.mrf.mxu0
    %v245 = vadd.f32 %v171, %v244
    %v246 = vpop.f32.mrf.mxu0
    %247 = vdwg.mxu0
    %248 = vst [vmem:[%s5] sm:$0xff] %v240
    %249 = vst [vmem:[%s5 + $0x8] sm:$0xff] %v245
    // Predicated region
    $region30: #{feed_forward.1} parent=1 // pred_check
      _
    $region31: #{feed_forward.1} parent=1 // pred_check_branch
      %251 = sbr.rel (0) target = $region33
    $region32: #{feed_forward.1} parent=1 // pred_region
      _
    $region33: #{feed_forward.1} parent=1 // pred_fallthru
      _
    // Predicated region
    $region34: #{feed_forward.1} parent=1 // pred_check
      _
    $region35: #{feed_forward.1} parent=1 // pred_check_branch
      %253 = sbr.rel (0) target = $region37
    $region36: #{feed_forward.1} parent=1 // pred_region
      _
    $region37: #{feed_forward.1} parent=1 // pred_fallthru
      _
    %254 = vsyncpa [#allocation3], 1
    %255 = vsyncpa [#allocation5], 1

</llo_original>
